<compile_context>
chip_gen: v6e
topology: v6e:2x2x1
jax: 0.10.0
libtpu: 0.0.40
codegen_flags: <defaults>
</compile_context>

<pallas_src>
import functools

import numpy as np

import jax
import jax.numpy as jnp
from jax import lax
from jax.experimental import pallas as pl
from jax.experimental.pallas import tpu as pltpu


# --------------------------------------------------------------------------------------
# Kernel
# --------------------------------------------------------------------------------------
def _double_conv_kernel(x_ref, w1_ref, s1_ref, b1_ref, w2_ref, s2_ref, b2_ref,
                        o_ref, *, H, W, C0, C1):
    """One batch element, both layers fused.

    x_ref:  (1, H, W*C0)           planar-dense input image
    w*_ref: (3*(W+2)*Cin, W*Cout)  banded im2col conv weights (host-precomputed)
    s*_ref: (1, W*Cout)            folded BN scale, tiled over W (lane-dense)
    b*_ref: (1, W*Cout)            folded BN bias,  tiled over W (lane-dense)
    o_ref:  (1, H, W*C1)           planar-dense output image (128 lanes for W=16,C1=8)
    """

    def conv_bn_lrelu(xd, w, scale, bias, cin):
        # xd: (H, W*cin) f32 planar-dense activation.
        # Reflect pad along W: insert cin-wide lane blocks (original columns 1 and W-2).
        left = xd[:, cin:2 * cin]
        right = xd[:, (W - 2) * cin:(W - 1) * cin]
        xw = jnp.concatenate([left, xd, right], axis=1)                # (H, (W+2)*cin)
        # Reflect pad along H (sublanes): rows 1 and H-2.
        xp = jnp.concatenate([xw[1:2], xw, xw[H - 2:H - 1]], axis=0)   # (H+2, (W+2)*cin)
        # im2col over dy: lane-concat the three row bands -> one big K axis.
        lhs = jnp.concatenate([xp[dy:dy + H, :] for dy in range(3)],
                              axis=1)                                  # (H, 3*(W+2)*cin)
        # Single MXU matmul per layer (K = 3*(W+2)*cin), f32 accumulation.
        y = jnp.dot(lhs, w, preferred_element_type=jnp.float32)        # (H, W*cout)
        y = y * scale + bias                                           # folded BN (eval)
        return jnp.where(y >= 0, y, 0.01 * y)                          # LeakyReLU(0.01)

    x = x_ref[0].astype(jnp.float32)                                   # (H, W*C0)
    h1 = conv_bn_lrelu(x, w1_ref[...], s1_ref[...], b1_ref[...], C0)   # (H, W*C1)
    # Dropout2d(0.3) is identity in eval mode.
    h2 = conv_bn_lrelu(h1, w2_ref[...], s2_ref[...], b2_ref[...], C1)  # (H, W*C1)
    o_ref[0] = h2.astype(o_ref.dtype)                                  # dense 128-lane store


# --------------------------------------------------------------------------------------
# Wrapper
# --------------------------------------------------------------------------------------
def double_conv(x_nchw, kernel_params):
    """Equivalent of DoubleConv.forward (eval mode). Input/output are NCHW."""
    (w1, s1, b1), (w2, s2, b2) = kernel_params
    N, C0, H, W = x_nchw.shape
    C1 = s1.shape[-1] // W
    C2 = s2.shape[-1] // W

    # NCHW -> planar-dense (N, H, W*C0).  Boundary glue only; kernel is NHWC-dense.
    x_dense = jnp.transpose(x_nchw, (0, 2, 3, 1)).reshape(N, H, W * C0)

    kernel = functools.partial(_double_conv_kernel, H=H, W=W, C0=C0, C1=C1)

    out_dense = pl.pallas_call(
        kernel,
        out_shape=jax.ShapeDtypeStruct((N, H, W * C2), x_nchw.dtype),
        grid_spec=pltpu.PrefetchScalarGridSpec(
            num_scalar_prefetch=0,
            grid=(N,),
            in_specs=[
                pl.BlockSpec((1, H, W * C0), lambda n: (n, 0, 0)),
                pl.BlockSpec(w1.shape, lambda n: (0, 0)),
                pl.BlockSpec(s1.shape, lambda n: (0, 0)),
                pl.BlockSpec(b1.shape, lambda n: (0, 0)),
                pl.BlockSpec(w2.shape, lambda n: (0, 0)),
                pl.BlockSpec(s2.shape, lambda n: (0, 0)),
                pl.BlockSpec(b2.shape, lambda n: (0, 0)),
            ],
            out_specs=pl.BlockSpec((1, H, W * C2), lambda n: (n, 0, 0)),
        ),
        compiler_params=pltpu.CompilerParams(
            dimension_semantics=("parallel",)),
    )(x_dense, w1, s1, b1, w2, s2, b2)

    # planar-dense -> NCHW.
    return jnp.transpose(out_dense.reshape(N, H, W, C2), (0, 3, 1, 2))


# --------------------------------------------------------------------------------------
# Parameters (PyTorch shapes) and host-side preprocessing
# --------------------------------------------------------------------------------------
def make_double_conv_params(key, in_channel, out_channel):
    """Deterministic raw parameters matching the PyTorch module's shapes."""
    keys = jax.random.split(key, 8)
    params = []
    cin = in_channel
    for i in range(2):
        # Conv2d weight, PyTorch layout (Cout, Cin, 3, 3), no bias.
        w_oihw = 0.1 * jax.random.normal(keys[4 * i + 0], (out_channel, cin, 3, 3),
                                         dtype=jnp.float32)
        gamma = 1.0 + 0.05 * jax.random.normal(keys[4 * i + 1], (out_channel,), jnp.float32)
        beta = 0.05 * jax.random.normal(keys[4 * i + 2], (out_channel,), jnp.float32)
        running_mean = 0.1 * jax.random.normal(keys[4 * i + 3], (out_channel,), jnp.float32)
        running_var = jnp.ones((out_channel,), jnp.float32) * 0.9
        params.append((w_oihw, gamma, beta, running_mean, running_var))
        cin = out_channel
    return params


def _build_banded_weight(w_oihw, W):
    """(Cout, Cin, 3, 3) conv weight -> (3*(W+2)*Cin, W*Cout) banded im2col matrix.

    Row index k = dy*(W+2)*Cin + w'*Cin + ci  (padded column w', channel ci, tap row dy)
    Col index j = w*Cout + co                 (output column w, output channel co)
    M[k, j] = weight[co, ci, dy, w'-w] if 0 <= w'-w <= 2 else 0.
    """
    w = np.asarray(w_oihw, np.float32)
    cout, cin, kh, kw = w.shape
    Wp = W + 2
    M = np.zeros((kh, Wp, cin, W, cout), np.float32)
    for dy in range(kh):
        for dx in range(kw):
            tap = w[:, :, dy, dx].T          # (cin, cout)
            for ww in range(W):
                M[dy, ww + dx, :, ww, :] = tap
    return jnp.asarray(M.reshape(kh * Wp * cin, W * cout))


def prepare_kernel_params(raw_params, W, eps=1e-5):
    """Fold eval-mode BN into scale/bias and build planar-dense banded weights."""
    prepared = []
    for (w_oihw, gamma, beta, mean, var) in raw_params:
        scale = gamma / jnp.sqrt(var + eps)
        bias = beta - mean * scale
        w_banded = _build_banded_weight(w_oihw, W)
        scale_d = jnp.tile(scale, W).reshape(1, -1).astype(jnp.float32)  # (1, W*Cout)
        bias_d = jnp.tile(bias, W).reshape(1, -1).astype(jnp.float32)
        prepared.append((w_banded, scale_d, bias_d))
    return prepared


# --------------------------------------------------------------------------------------
# Pure-JAX reference (lax.conv) for correctness check
# --------------------------------------------------------------------------------------
def _reference(x_nchw, raw_params, eps=1e-5):
    x = x_nchw
    for (w_oihw, gamma, beta, mean, var) in raw_params:
        scale = gamma / jnp.sqrt(var + eps)
        bias = beta - mean * scale
        xp = jnp.pad(x, ((0, 0), (0, 0), (1, 1), (1, 1)), mode="reflect")
        y = lax.conv_general_dilated(xp, w_oihw, (1, 1), "VALID",
                                     dimension_numbers=("NCHW", "OIHW", "NCHW"),
                                     precision=lax.Precision.HIGHEST)
        y = y * scale[None, :, None, None] + bias[None, :, None, None]
        x = jnp.where(y >= 0, y, 0.01 * y)
    return x


if __name__ == "__main__":
    key = jax.random.PRNGKey(0)
    k_x, k_p = jax.random.split(key)

    N, Cin, H, W = 2, 4, 16, 16
    Cout = 8
    x = jax.random.normal(k_x, (N, Cin, H, W), dtype=jnp.float32)

    raw_params = make_double_conv_params(k_p, Cin, Cout)
    kernel_params = prepare_kernel_params(raw_params, W)

    out = double_conv(x, kernel_params)
    out = jax.block_until_ready(out)

    ref = _reference(x, raw_params)
    assert out.shape == (N, Cout, H, W)
    assert jnp.allclose(out, ref, atol=1e-4, rtol=1e-4), float(jnp.max(jnp.abs(out - ref)))

    print("KERNEL_OK")
</pallas_src>

<mosaic_0001>
module attributes {stable_mosaic.version = 11 : i64} {
  func.func @_double_conv_kernel(%arg0: i32, %arg1: memref<1x16x64xf32, #tpu.memory_space<vmem>>, %arg2: memref<216x128xf32, #tpu.memory_space<vmem>>, %arg3: memref<1x128xf32, #tpu.memory_space<vmem>>, %arg4: memref<1x128xf32, #tpu.memory_space<vmem>>, %arg5: memref<432x128xf32, #tpu.memory_space<vmem>>, %arg6: memref<1x128xf32, #tpu.memory_space<vmem>>, %arg7: memref<1x128xf32, #tpu.memory_space<vmem>>, %arg8: memref<1x16x128xf32, #tpu.memory_space<vmem>>) attributes {dimension_semantics = [#tpu.dimension_semantics<parallel>], iteration_bounds = array<i64: 2>, scalar_prefetch = 0 : i64, scratch_operands = 0 : i64, tpu.core_type = #tpu.core_type<tc>, window_params = [{transform_indices = @transform_0, window_bounds = array<i64: 1, 16, 64>}, {pipeline_mode = #tpu.pipeline_mode<synchronous>, transform_indices = @transform_1, window_bounds = array<i64: 216, 128>}, {pipeline_mode = #tpu.pipeline_mode<synchronous>, transform_indices = @transform_2, window_bounds = array<i64: 1, 128>}, {pipeline_mode = #tpu.pipeline_mode<synchronous>, transform_indices = @transform_3, window_bounds = array<i64: 1, 128>}, {pipeline_mode = #tpu.pipeline_mode<synchronous>, transform_indices = @transform_4, window_bounds = array<i64: 432, 128>}, {pipeline_mode = #tpu.pipeline_mode<synchronous>, transform_indices = @transform_5, window_bounds = array<i64: 1, 128>}, {pipeline_mode = #tpu.pipeline_mode<synchronous>, transform_indices = @transform_6, window_bounds = array<i64: 1, 128>}, {transform_indices = @transform_7, window_bounds = array<i64: 1, 16, 128>}]} {
    %c0 = arith.constant 0 : index
    %c0_0 = arith.constant 0 : index
    %c0_1 = arith.constant 0 : index
    %0 = vector.load %arg1[%c0, %c0_0, %c0_1] : memref<1x16x64xf32, #tpu.memory_space<vmem>>, vector<1x16x64xf32>
    %1 = vector.shape_cast %0 : vector<1x16x64xf32> to vector<16x64xf32>
    %c0_2 = arith.constant 0 : index
    %c0_3 = arith.constant 0 : index
    %2 = vector.load %arg2[%c0_2, %c0_3] : memref<216x128xf32, #tpu.memory_space<vmem>>, vector<216x128xf32>
    %c0_4 = arith.constant 0 : index
    %c0_5 = arith.constant 0 : index
    %3 = vector.load %arg3[%c0_4, %c0_5] : memref<1x128xf32, #tpu.memory_space<vmem>>, vector<1x128xf32>
    %c0_6 = arith.constant 0 : index
    %c0_7 = arith.constant 0 : index
    %4 = vector.load %arg4[%c0_6, %c0_7] : memref<1x128xf32, #tpu.memory_space<vmem>>, vector<1x128xf32>
    %5 = vector.extract_strided_slice %1 {offsets = [0, 4], sizes = [16, 4], strides = [1, 1]} : vector<16x64xf32> to vector<16x4xf32>
    %6 = vector.extract_strided_slice %1 {offsets = [0, 56], sizes = [16, 4], strides = [1, 1]} : vector<16x64xf32> to vector<16x4xf32>
    %7 = tpu.concatenate %5, %1, %6 in 1 : vector<16x4xf32>, vector<16x64xf32>, vector<16x4xf32> -> vector<16x72xf32>
    %8 = vector.extract_strided_slice %7 {offsets = [1, 0], sizes = [1, 72], strides = [1, 1]} : vector<16x72xf32> to vector<1x72xf32>
    %9 = vector.extract_strided_slice %7 {offsets = [14, 0], sizes = [1, 72], strides = [1, 1]} : vector<16x72xf32> to vector<1x72xf32>
    %10 = tpu.concatenate %8, %7, %9 in 0 : vector<1x72xf32>, vector<16x72xf32>, vector<1x72xf32> -> vector<18x72xf32>
    %11 = vector.extract_strided_slice %10 {offsets = [0, 0], sizes = [16, 72], strides = [1, 1]} : vector<18x72xf32> to vector<16x72xf32>
    %12 = vector.extract_strided_slice %10 {offsets = [1, 0], sizes = [16, 72], strides = [1, 1]} : vector<18x72xf32> to vector<16x72xf32>
    %13 = vector.extract_strided_slice %10 {offsets = [2, 0], sizes = [16, 72], strides = [1, 1]} : vector<18x72xf32> to vector<16x72xf32>
    %14 = tpu.concatenate %11, %12, %13 in 1 : vector<16x72xf32>, vector<16x72xf32>, vector<16x72xf32> -> vector<16x216xf32>
    %cst = arith.constant dense<0.000000e+00> : vector<16x128xf32>
    %15 = tpu.matmul %14, %2, %cst {dimension_numbers = #tpu.dot_dimension_numbers<[1], [0], [0], [1], [0, 0, 1, 1], [], []>} : vector<16x216xf32>, vector<216x128xf32>, vector<16x128xf32> -> vector<16x128xf32>
    %16 = vector.broadcast %3 : vector<1x128xf32> to vector<16x128xf32>
    %17 = arith.mulf %15, %16 : vector<16x128xf32>
    %18 = vector.broadcast %4 : vector<1x128xf32> to vector<16x128xf32>
    %19 = arith.addf %17, %18 : vector<16x128xf32>
    %cst_8 = arith.constant 0.000000e+00 : f32
    %20 = vector.broadcast %cst_8 : f32 to vector<16x128xf32>
    %21 = arith.cmpf oge, %19, %20 : vector<16x128xf32>
    %cst_9 = arith.constant 0.00999999977 : f32
    %22 = vector.broadcast %cst_9 : f32 to vector<16x128xf32>
    %23 = arith.mulf %22, %19 : vector<16x128xf32>
    %24 = arith.select %21, %19, %23 : vector<16x128xi1>, vector<16x128xf32>
    %c0_10 = arith.constant 0 : index
    %c0_11 = arith.constant 0 : index
    %25 = vector.load %arg5[%c0_10, %c0_11] : memref<432x128xf32, #tpu.memory_space<vmem>>, vector<432x128xf32>
    %c0_12 = arith.constant 0 : index
    %c0_13 = arith.constant 0 : index
    %26 = vector.load %arg6[%c0_12, %c0_13] : memref<1x128xf32, #tpu.memory_space<vmem>>, vector<1x128xf32>
    %c0_14 = arith.constant 0 : index
    %c0_15 = arith.constant 0 : index
    %27 = vector.load %arg7[%c0_14, %c0_15] : memref<1x128xf32, #tpu.memory_space<vmem>>, vector<1x128xf32>
    %28 = vector.extract_strided_slice %24 {offsets = [0, 8], sizes = [16, 8], strides = [1, 1]} : vector<16x128xf32> to vector<16x8xf32>
    %29 = vector.extract_strided_slice %24 {offsets = [0, 112], sizes = [16, 8], strides = [1, 1]} : vector<16x128xf32> to vector<16x8xf32>
    %30 = tpu.concatenate %28, %24, %29 in 1 : vector<16x8xf32>, vector<16x128xf32>, vector<16x8xf32> -> vector<16x144xf32>
    %31 = vector.extract_strided_slice %30 {offsets = [1, 0], sizes = [1, 144], strides = [1, 1]} : vector<16x144xf32> to vector<1x144xf32>
    %32 = vector.extract_strided_slice %30 {offsets = [14, 0], sizes = [1, 144], strides = [1, 1]} : vector<16x144xf32> to vector<1x144xf32>
    %33 = tpu.concatenate %31, %30, %32 in 0 : vector<1x144xf32>, vector<16x144xf32>, vector<1x144xf32> -> vector<18x144xf32>
    %34 = vector.extract_strided_slice %33 {offsets = [0, 0], sizes = [16, 144], strides = [1, 1]} : vector<18x144xf32> to vector<16x144xf32>
    %35 = vector.extract_strided_slice %33 {offsets = [1, 0], sizes = [16, 144], strides = [1, 1]} : vector<18x144xf32> to vector<16x144xf32>
    %36 = vector.extract_strided_slice %33 {offsets = [2, 0], sizes = [16, 144], strides = [1, 1]} : vector<18x144xf32> to vector<16x144xf32>
    %37 = tpu.concatenate %34, %35, %36 in 1 : vector<16x144xf32>, vector<16x144xf32>, vector<16x144xf32> -> vector<16x432xf32>
    %cst_16 = arith.constant dense<0.000000e+00> : vector<16x128xf32>
    %38 = tpu.matmul %37, %25, %cst_16 {dimension_numbers = #tpu.dot_dimension_numbers<[1], [0], [0], [1], [0, 0, 1, 1], [], []>} : vector<16x432xf32>, vector<432x128xf32>, vector<16x128xf32> -> vector<16x128xf32>
    %39 = vector.broadcast %26 : vector<1x128xf32> to vector<16x128xf32>
    %40 = arith.mulf %38, %39 : vector<16x128xf32>
    %41 = vector.broadcast %27 : vector<1x128xf32> to vector<16x128xf32>
    %42 = arith.addf %40, %41 : vector<16x128xf32>
    %cst_17 = arith.constant 0.000000e+00 : f32
    %43 = vector.broadcast %cst_17 : f32 to vector<16x128xf32>
    %44 = arith.cmpf oge, %42, %43 : vector<16x128xf32>
    %cst_18 = arith.constant 0.00999999977 : f32
    %45 = vector.broadcast %cst_18 : f32 to vector<16x128xf32>
    %46 = arith.mulf %45, %42 : vector<16x128xf32>
    %47 = arith.select %44, %42, %46 : vector<16x128xi1>, vector<16x128xf32>
    %c0_19 = arith.constant 0 : index
    %c0_20 = arith.constant 0 : index
    %c0_21 = arith.constant 0 : index
    %48 = vector.load %arg8[%c0_19, %c0_20, %c0_21] : memref<1x16x128xf32, #tpu.memory_space<vmem>>, vector<1x16x128xf32>
    %49 = vector.shape_cast %48 : vector<1x16x128xf32> to vector<16x128xf32>
    %50 = vector.shape_cast %47 : vector<16x128xf32> to vector<1x16x128xf32>
    tpu.vector_store %arg8[%c0_19, %c0_20, %c0_21], %50 {strides = array<i32>} : memref<1x16x128xf32, #tpu.memory_space<vmem>>, vector<1x16x128xf32>,
    return
  }
  func.func @transform_0(%arg0: i32) -> (i32, i32, i32) {
    %c0_i32 = arith.constant 0 : i32
    %c0_i32_0 = arith.constant 0 : i32
    %c0_i32_1 = arith.constant 0 : i32
    return %arg0, %c0_i32, %c0_i32_0 : i32, i32, i32
  }
  func.func @transform_1(%arg0: i32) -> (i32, i32) {
    %c0_i32 = arith.constant 0 : i32
    %c0_i32_0 = arith.constant 0 : i32
    %c0_i32_1 = arith.constant 0 : i32
    return %c0_i32, %c0_i32_0 : i32, i32
  }
  func.func @transform_2(%arg0: i32) -> (i32, i32) {
    %c0_i32 = arith.constant 0 : i32
    %c0_i32_0 = arith.constant 0 : i32
    %c0_i32_1 = arith.constant 0 : i32
    return %c0_i32, %c0_i32_0 : i32, i32
  }
  func.func @transform_3(%arg0: i32) -> (i32, i32) {
    %c0_i32 = arith.constant 0 : i32
    %c0_i32_0 = arith.constant 0 : i32
    %c0_i32_1 = arith.constant 0 : i32
    return %c0_i32, %c0_i32_0 : i32, i32
  }
  func.func @transform_4(%arg0: i32) -> (i32, i32) {
    %c0_i32 = arith.constant 0 : i32
    %c0_i32_0 = arith.constant 0 : i32
    %c0_i32_1 = arith.constant 0 : i32
    return %c0_i32, %c0_i32_0 : i32, i32
  }
  func.func @transform_5(%arg0: i32) -> (i32, i32) {
    %c0_i32 = arith.constant 0 : i32
    %c0_i32_0 = arith.constant 0 : i32
    %c0_i32_1 = arith.constant 0 : i32
    return %c0_i32, %c0_i32_0 : i32, i32
  }
  func.func @transform_6(%arg0: i32) -> (i32, i32) {
    %c0_i32 = arith.constant 0 : i32
    %c0_i32_0 = arith.constant 0 : i32
    %c0_i32_1 = arith.constant 0 : i32
    return %c0_i32, %c0_i32_0 : i32, i32
  }
  func.func @transform_7(%arg0: i32) -> (i32, i32, i32) {
    %c0_i32 = arith.constant 0 : i32
    %c0_i32_0 = arith.constant 0 : i32
    %c0_i32_1 = arith.constant 0 : i32
    return %arg0, %c0_i32, %c0_i32_0 : i32, i32, i32
  }
}

</mosaic_0001>

<llo_original>
// kernel: tpu_custom_call.1
$region0: #{tpu_custom_call.1}
  #allocation0 [shape = 'u32[]', space=smem, size = 0x4, offset = 0x4, fixed_abs, tag = 'smem constant byte address 0x4 - core index']
  #allocation1 [shape = 'u32[144,128]{1,0:T(1,128)}', space=vmem, size = 0x12000, scoped, tag = 'internal scratch']
  %s0 = inlined_call_operand.hbm [shape: f32[2,16,64], index: 0, kind: input, shape index: {}]
  %s1 = inlined_call_operand.hbm [shape: f32[216,128], index: 1, kind: input, shape index: {}]
  %s2 = inlined_call_operand.vmem [shape: f32[1,128], index: 2, kind: input, shape index: {}]
  %s3 = inlined_call_operand.vmem [shape: f32[1,128], index: 3, kind: input, shape index: {}]
  %s4 = inlined_call_operand.hbm [shape: f32[432,128], index: 4, kind: input, shape index: {}]
  %s5 = inlined_call_operand.vmem [shape: f32[1,128], index: 5, kind: input, shape index: {}]
  %s6 = inlined_call_operand.vmem [shape: f32[1,128], index: 6, kind: input, shape index: {}]
  %s7 = inlined_call_operand.hbm [shape: f32[2,16,128], index: 7, kind: output, shape index: {}]
  %s8 = sld [smem:[#allocation0]]
  $region73: #{tpu_custom_call.1} parent=0
    _
  %s10 = ssub.s32 1, %s8
  %s11 = scalar_select 0, %s10, %s8
  $region1: #{tpu_custom_call.1} parent=0
    #allocation2 [shape = 'u8[16384]{0}', space=vmem, size = 0x4000, scoped, tag = 'input window, operand 0']
    #allocation3 [shape = 's32[2]{0}', space=sflag, size = 0x8, scoped, tag = 'scoped memory for tpu_custom_call.1']
    #allocation4 [shape = 's32[2]{0}', space=sflag, size = 0x8, scoped, tag = 'scoped memory for tpu_custom_call.1']
    #allocation5 [shape = 'u8[110592]{0}', space=vmem, size = 0x1b000, scoped, tag = 'input window, operand 1, single buffered']
    #allocation6 [shape = 's32[1]{0}', space=sflag, size = 0x4, scoped, tag = 'scoped memory for tpu_custom_call.1']
    #allocation7 [shape = 'u8[221184]{0}', space=vmem, size = 0x36000, scoped, tag = 'input window, operand 4, single buffered']
    #allocation8 [shape = 'u8[16384]{0}', space=vmem, size = 0x4000, scoped, tag = 'output window, operand 0']
    %12 = vsyncpa [#allocation3], 0
    %s13 = scalar_lea.sflag [#allocation3], 1
    %14 = vsyncpa %s13, 0
    %15 = vsyncpa [#allocation6], 0
    %16 = vsyncpa [#allocation4], 0
    %s17 = scalar_lea.sflag [#allocation4], 1
    %18 = vsyncpa %s17, 0
    loop: start=0, step=1, limit=4
    $region2: #{tpu_custom_call.1} parent=1 // loop_pre_header
      _
    $region3: #{tpu_custom_call.1} parent=1 // loop_header
      %s20 = sphi 0, %s24
      %p21 = scmp.ge.s32.totalorder %s20, 4
      %s30 = sphi 0, %s32
      %s33 = sphi 0, %s30
      %s34 = sphi 0, %s33
      %s50 = sphi 0, %s34
      %s54 = sphi 0, %s54
      %s56 = sphi 0, %s54
      %s57 = sphi 0, %s56
      %s71 = sphi 0, %s57
      %s75 = sphi 0, %s75
      %s77 = sphi 0, %s75
      %s78 = sphi 0, %s77
      %s92 = sphi 0, %s78
      %s96 = sphi 0, %s96
      %s98 = sphi 0, %s96
      %s99 = sphi 0, %s98
      %s113 = sphi 0, %s99
      %s117 = sphi 0, %s117
      %s119 = sphi 0, %s117
      %s120 = sphi 0, %s119
      %s134 = sphi 0, %s120
      %s138 = sphi 0, %s138
      %s140 = sphi 0, %s138
      %s141 = sphi 0, %s140
      %s155 = sphi 0, %s141
      %s159 = sphi 0, %s159
      %s161 = sphi 0, %s159
      %s162 = sphi 0, %s161
      %s176 = sphi 0, %s162
      %s182 = sphi 0, %s184
      %s185 = sphi 0, %s182
      %s186 = sphi 0, %s185
      %s202 = sphi 0, %s186
    $region4: #{tpu_custom_call.1} parent=1 // loop_header_branch
      %23 = sbr.rel (%p21) target = $region8
    $region5: #{tpu_custom_call.1} parent=1 // loop_body
      %s25 = ssub.s32 %s20, 1
      %s26 = ssub.s32 %s20, 2
      %s27 = sadd.s32 %s20, 1
      %s28 = ssub.s32 %s20, %s27
      %p29 = scmp.eq.s32.totalorder %s28, 0
      %s31 = sadd.s32 %s30, 1
      %s32 = scalar_select %p29, %s30, %s31
      %p35 = pneg %p29
      %p36 = scmp.eq.s32.totalorder %s20, 1
      %p37 = por %p35, %p36
      %p38 = scmp.ne.s32.totalorder %s30, %s33
      %p39 = scmp.eq.s32.totalorder %s20, 0
      %p40 = por %p38, %p39
      %p41 = scmp.ne.s32.totalorder %s30, %s33
      %p42 = scmp.eq.s32.totalorder %s25, 1
      %p43 = por %p41, %p42
      %p44 = scmp.ne.s32.totalorder %s33, %s34
      %p45 = scmp.eq.s32.totalorder %s25, 0
      %p46 = por %p44, %p45
      %p47 = scmp.ne.s32.totalorder %s33, %s34
      %p48 = scmp.eq.s32.totalorder %s26, 1
      %p49 = por %p47, %p48
      %p51 = scmp.ne.s32.totalorder %s34, %s50
      %p52 = scmp.eq.s32.totalorder %s26, 0
      %p53 = por %p51, %p52
      %s55 = sadd.s32 %s54, 1
      %p58 = scmp.eq.s32.totalorder %s20, 1
      %p59 = scmp.ne.s32.totalorder %s54, %s56
      %p60 = scmp.eq.s32.totalorder %s20, 0
      %p61 = por %p59, %p60
      %p62 = scmp.ne.s32.totalorder %s54, %s56
      %p63 = scmp.eq.s32.totalorder %s25, 1
      %p64 = por %p62, %p63
      %p65 = scmp.ne.s32.totalorder %s56, %s57
      %p66 = scmp.eq.s32.totalorder %s25, 0
      %p67 = por %p65, %p66
      %p68 = scmp.ne.s32.totalorder %s56, %s57
      %p69 = scmp.eq.s32.totalorder %s26, 1
      %p70 = por %p68, %p69
      %p72 = scmp.ne.s32.totalorder %s57, %s71
      %p73 = scmp.eq.s32.totalorder %s26, 0
      %p74 = por %p72, %p73
      %s76 = sadd.s32 %s75, 1
      %p79 = scmp.eq.s32.totalorder %s20, 1
      %p80 = scmp.ne.s32.totalorder %s75, %s77
      %p81 = scmp.eq.s32.totalorder %s20, 0
      %p82 = por %p80, %p81
      %p83 = scmp.ne.s32.totalorder %s75, %s77
      %p84 = scmp.eq.s32.totalorder %s25, 1
      %p85 = por %p83, %p84
      %p86 = scmp.ne.s32.totalorder %s77, %s78
      %p87 = scmp.eq.s32.totalorder %s25, 0
      %p88 = por %p86, %p87
      %p89 = scmp.ne.s32.totalorder %s77, %s78
      %p90 = scmp.eq.s32.totalorder %s26, 1
      %p91 = por %p89, %p90
      %p93 = scmp.ne.s32.totalorder %s78, %s92
      %p94 = scmp.eq.s32.totalorder %s26, 0
      %p95 = por %p93, %p94
      %s97 = sadd.s32 %s96, 1
      %p100 = scmp.eq.s32.totalorder %s20, 1
      %p101 = scmp.ne.s32.totalorder %s96, %s98
      %p102 = scmp.eq.s32.totalorder %s20, 0
      %p103 = por %p101, %p102
      %p104 = scmp.ne.s32.totalorder %s96, %s98
      %p105 = scmp.eq.s32.totalorder %s25, 1
      %p106 = por %p104, %p105
      %p107 = scmp.ne.s32.totalorder %s98, %s99
      %p108 = scmp.eq.s32.totalorder %s25, 0
      %p109 = por %p107, %p108
      %p110 = scmp.ne.s32.totalorder %s98, %s99
      %p111 = scmp.eq.s32.totalorder %s26, 1
      %p112 = por %p110, %p111
      %p114 = scmp.ne.s32.totalorder %s99, %s113
      %p115 = scmp.eq.s32.totalorder %s26, 0
      %p116 = por %p114, %p115
      %s118 = sadd.s32 %s117, 1
      %p121 = scmp.eq.s32.totalorder %s20, 1
      %p122 = scmp.ne.s32.totalorder %s117, %s119
      %p123 = scmp.eq.s32.totalorder %s20, 0
      %p124 = por %p122, %p123
      %p125 = scmp.ne.s32.totalorder %s117, %s119
      %p126 = scmp.eq.s32.totalorder %s25, 1
      %p127 = por %p125, %p126
      %p128 = scmp.ne.s32.totalorder %s119, %s120
      %p129 = scmp.eq.s32.totalorder %s25, 0
      %p130 = por %p128, %p129
      %p131 = scmp.ne.s32.totalorder %s119, %s120
      %p132 = scmp.eq.s32.totalorder %s26, 1
      %p133 = por %p131, %p132
      %p135 = scmp.ne.s32.totalorder %s120, %s134
      %p136 = scmp.eq.s32.totalorder %s26, 0
      %p137 = por %p135, %p136
      %s139 = sadd.s32 %s138, 1
      %p142 = scmp.eq.s32.totalorder %s20, 1
      %p143 = scmp.ne.s32.totalorder %s138, %s140
      %p144 = scmp.eq.s32.totalorder %s20, 0
      %p145 = por %p143, %p144
      %p146 = scmp.ne.s32.totalorder %s138, %s140
      %p147 = scmp.eq.s32.totalorder %s25, 1
      %p148 = por %p146, %p147
      %p149 = scmp.ne.s32.totalorder %s140, %s141
      %p150 = scmp.eq.s32.totalorder %s25, 0
      %p151 = por %p149, %p150
      %p152 = scmp.ne.s32.totalorder %s140, %s141
      %p153 = scmp.eq.s32.totalorder %s26, 1
      %p154 = por %p152, %p153
      %p156 = scmp.ne.s32.totalorder %s141, %s155
      %p157 = scmp.eq.s32.totalorder %s26, 0
      %p158 = por %p156, %p157
      %s160 = sadd.s32 %s159, 1
      %p163 = scmp.eq.s32.totalorder %s20, 1
      %p164 = scmp.ne.s32.totalorder %s159, %s161
      %p165 = scmp.eq.s32.totalorder %s20, 0
      %p166 = por %p164, %p165
      %p167 = scmp.ne.s32.totalorder %s159, %s161
      %p168 = scmp.eq.s32.totalorder %s25, 1
      %p169 = por %p167, %p168
      %p170 = scmp.ne.s32.totalorder %s161, %s162
      %p171 = scmp.eq.s32.totalorder %s25, 0
      %p172 = por %p170, %p171
      %p173 = scmp.ne.s32.totalorder %s161, %s162
      %p174 = scmp.eq.s32.totalorder %s26, 1
      %p175 = por %p173, %p174
      %p177 = scmp.ne.s32.totalorder %s162, %s176
      %p178 = scmp.eq.s32.totalorder %s26, 0
      %p179 = por %p177, %p178
      %s180 = ssub.s32 %s20, %s27
      %p181 = scmp.eq.s32.totalorder %s180, 0
      %s183 = sadd.s32 %s182, 1
      %s184 = scalar_select %p181, %s182, %s183
      %p187 = pneg %p181
      %p188 = scmp.eq.s32.totalorder %s20, 1
      %p189 = por %p187, %p188
      %p190 = scmp.ne.s32.totalorder %s182, %s185
      %p191 = scmp.eq.s32.totalorder %s20, 0
      %p192 = por %p190, %p191
      %p193 = scmp.ne.s32.totalorder %s182, %s185
      %p194 = scmp.eq.s32.totalorder %s25, 1
      %p195 = por %p193, %p194
      %p196 = scmp.ne.s32.totalorder %s185, %s186
      %p197 = scmp.eq.s32.totalorder %s25, 0
      %p198 = por %p196, %p197
      %p199 = scmp.ne.s32.totalorder %s185, %s186
      %p200 = scmp.eq.s32.totalorder %s26, 1
      %p201 = por %p199, %p200
      %p203 = scmp.ne.s32.totalorder %s186, %s202
      %p204 = scmp.eq.s32.totalorder %s26, 0
      %p205 = por %p203, %p204
      %p206 = scmp.le.s32.totalorder 1, %s20
      %p207 = scmp.lt.s32.totalorder %s20, 3
      %p208 = pnand %p206, %p207
      %p209 = pneg %p208
      // Predicated region
      $region9: #{tpu_custom_call.1} parent=5 // pred_check
        _
      $region10: #{tpu_custom_call.1} parent=5 // pred_check_branch
        %211 = sbr.rel (%p208) target = $region12
      $region11: #{tpu_custom_call.1} parent=5 // pred_region
        %s212 = ssub.s32 %s20, 1
        // Predicated region
        $region13: #{tpu_custom_call.1} parent=11 // pred_check
          %p213 = pneg %p67
        $region14: #{tpu_custom_call.1} parent=11 // pred_check_branch
          %215 = sbr.rel (%p213) target = $region16
        $region15: #{tpu_custom_call.1} parent=11 // pred_region
          %s217 = ssub.s32 3456, 3456
          %218 = vsyncadd [#allocation6], %s217
          %s219 = sshll.u32 [#allocation5], 4
          %s220 = int_to_ptr.vmem [resolvable:$true] %s219
          %225 = dma.hbm_to_vmem [thread:$0]  %s1, 3456, %s220, [#allocation6], 128, 128, 8
        $region16: #{tpu_custom_call.1} parent=11 // pred_fallthru
          _
        // Predicated region
        $region17: #{tpu_custom_call.1} parent=11 // pred_check
          %p226 = pneg %p88
        $region18: #{tpu_custom_call.1} parent=11 // pred_check_branch
          %228 = sbr.rel (%p226) target = $region20
        $region19: #{tpu_custom_call.1} parent=11 // pred_region
          _
        $region20: #{tpu_custom_call.1} parent=11 // pred_fallthru
          _
        // Predicated region
        $region21: #{tpu_custom_call.1} parent=11 // pred_check
          %p229 = pneg %p109
        $region22: #{tpu_custom_call.1} parent=11 // pred_check_branch
          %231 = sbr.rel (%p229) target = $region24
        $region23: #{tpu_custom_call.1} parent=11 // pred_region
          _
        $region24: #{tpu_custom_call.1} parent=11 // pred_fallthru
          _
        // Predicated region
        $region25: #{tpu_custom_call.1} parent=11 // pred_check
          %p232 = pneg %p130
        $region26: #{tpu_custom_call.1} parent=11 // pred_check_branch
          %234 = sbr.rel (%p232) target = $region28
        $region27: #{tpu_custom_call.1} parent=11 // pred_region
          %s236 = ssub.s32 6912, 6912
          %237 = vsyncadd [#allocation6], %s236
          %s238 = sshll.u32 [#allocation7], 4
          %s239 = int_to_ptr.vmem [resolvable:$true] %s238
          %244 = dma.hbm_to_vmem [thread:$0]  %s4, 6912, %s239, [#allocation6], 128, 128, 8
        $region28: #{tpu_custom_call.1} parent=11 // pred_fallthru
          _
        // Predicated region
        $region29: #{tpu_custom_call.1} parent=11 // pred_check
          %p245 = pneg %p151
        $region30: #{tpu_custom_call.1} parent=11 // pred_check_branch
          %247 = sbr.rel (%p245) target = $region32
        $region31: #{tpu_custom_call.1} parent=11 // pred_region
          _
        $region32: #{tpu_custom_call.1} parent=11 // pred_fallthru
          _
        // Predicated region
        $region33: #{tpu_custom_call.1} parent=11 // pred_check
          %p248 = pneg %p172
        $region34: #{tpu_custom_call.1} parent=11 // pred_check_branch
          %250 = sbr.rel (%p248) target = $region36
        $region35: #{tpu_custom_call.1} parent=11 // pred_region
          _
        $region36: #{tpu_custom_call.1} parent=11 // pred_fallthru
          _
      $region12: #{tpu_custom_call.1} parent=5 // pred_fallthru
        _
      %p251 = scmp.lt.s32.totalorder %s20, 2
      // Predicated region
      $region37: #{tpu_custom_call.1} parent=5 // pred_check
        %p252 = pneg %p251
      $region38: #{tpu_custom_call.1} parent=5 // pred_check_branch
        %254 = sbr.rel (%p252) target = $region40
      $region39: #{tpu_custom_call.1} parent=5 // pred_region
        // Predicated region
        $region41: #{tpu_custom_call.1} parent=39 // pred_check
          %p255 = pneg %p40
        $region42: #{tpu_custom_call.1} parent=39 // pred_check_branch
          %257 = sbr.rel (%p255) target = $region44
        $region43: #{tpu_custom_call.1} parent=39 // pred_region
          %s258 = sand.u32 %s30, 1
          %s259 = scalar_lea.sflag [#allocation3], %s258
          %s260 = sand.u32 %s30, 1
          %s261 = smul.addr %s260, 16
          %s262 = scalar_lea.vmem [#allocation2], %s261
          %s264 = ssub.s32 256, 256
          %265 = vsyncadd %s259, %s264
          %s266 = smul.addr %s20, 2
          %s267 = smul.addr %s266, 128
          %s268 = scalar_lea.hbm %s0, %s267
          %s269 = sshll.u32 %s262, 4
          %s270 = int_to_ptr.vmem [resolvable:$true] %s269
          %275 = dma.hbm_to_vmem [thread:$0]  %s268, 256, %s270, %s259, 128, 128, 8
        $region44: #{tpu_custom_call.1} parent=39 // pred_fallthru
          _
      $region40: #{tpu_custom_call.1} parent=5 // pred_fallthru
        _
      %p276 = scmp.le.s32.totalorder 1, %s20
      %p277 = scmp.lt.s32.totalorder %s20, 3
      %p278 = pnand %p276, %p277
      %p279 = pneg %p278
      // Predicated region
      $region45: #{tpu_custom_call.1} parent=5 // pred_check
        _
      $region46: #{tpu_custom_call.1} parent=5 // pred_check_branch
        %281 = sbr.rel (%p278) target = $region48
      $region47: #{tpu_custom_call.1} parent=5 // pred_region
        %s282 = ssub.s32 %s20, 1
        %s283 = sand.u32 %s33, 1
        %s284 = scalar_lea.sflag [#allocation3], %s283
        %s285 = sand.u32 %s33, 1
        %s286 = smul.addr %s285, 16
        %s287 = scalar_lea.vmem [#allocation2], %s286
        // Predicated region
        $region49: #{tpu_custom_call.1} parent=47 // pred_check
          %p288 = pneg %p46
        $region50: #{tpu_custom_call.1} parent=47 // pred_check_branch
          %290 = sbr.rel (%p288) target = $region52
        $region51: #{tpu_custom_call.1} parent=47 // pred_region
          %291 = dma.done %s284, 256
        $region52: #{tpu_custom_call.1} parent=47 // pred_fallthru
          _
        // Predicated region
        $region53: #{tpu_custom_call.1} parent=47 // pred_check
          %p292 = pneg %p67
        $region54: #{tpu_custom_call.1} parent=47 // pred_check_branch
          %294 = sbr.rel (%p292) target = $region56
        $region55: #{tpu_custom_call.1} parent=47 // pred_region
          %295 = dma.done [#allocation6], 3456
        $region56: #{tpu_custom_call.1} parent=47 // pred_fallthru
          _
        // Predicated region
        $region57: #{tpu_custom_call.1} parent=47 // pred_check
          %p296 = pneg %p130
        $region58: #{tpu_custom_call.1} parent=47 // pred_check_branch
          %298 = sbr.rel (%p296) target = $region60
        $region59: #{tpu_custom_call.1} parent=47 // pred_region
          %299 = dma.done [#allocation6], 6912
        $region60: #{tpu_custom_call.1} parent=47 // pred_fallthru
          _
        %s300 = sand.u32 %s33, 1
        %s301 = scalar_lea.sflag [#allocation3], %s300
        %s302 = sand.u32 %s33, 1
        %s303 = smul.addr %s302, 16
        %s304 = scalar_lea.vmem [#allocation2], %s303
        %p305 = pneg %p46
        %p306 = pneg %p43
        %p307 = pneg %p67
        %p308 = pneg %p64
        %p309 = pneg %p88
        %p310 = pneg %p85
        %p311 = pneg %p109
        %p312 = pneg %p106
        %p313 = pneg %p130
        %p314 = pneg %p127
        %p315 = pneg %p151
        %p316 = pneg %p148
        %p317 = pneg %p172
        %p318 = pneg %p169
        %p319 = pneg %p198
        %p320 = pneg %p195
        %s321 = sand.u32 %s185, 1
        %s322 = scalar_lea.sflag [#allocation4], %s321
        %s323 = sand.u32 %s185, 1
        %s324 = smul.addr %s323, 16
        %s325 = scalar_lea.vmem [#allocation8], %s324
        %v326 = vld [vmem:[%s287] sm:$0xff]
        %v327 = vld [vmem:[%s287 + $0x8] sm:$0xff]
        %v328 = vld [vmem:[#allocation5] sm:$0xff]
        %v329 = vld [vmem:[#allocation5 + $0x8] sm:$0xff]
        %v330 = vld [vmem:[#allocation5 + $0x10] sm:$0xff]
        %v331 = vld [vmem:[#allocation5 + $0x18] sm:$0xff]
        %v332 = vld [vmem:[#allocation5 + $0x20] sm:$0xff]
        %v333 = vld [vmem:[#allocation5 + $0x28] sm:$0xff]
        %v334 = vld [vmem:[#allocation5 + $0x30] sm:$0xff]
        %v335 = vld [vmem:[#allocation5 + $0x38] sm:$0xff]
        %v336 = vld [vmem:[#allocation5 + $0x40] sm:$0xff]
        %v337 = vld [vmem:[#allocation5 + $0x48] sm:$0xff]
        %v338 = vld [vmem:[#allocation5 + $0x50] sm:$0xff]
        %v339 = vld [vmem:[#allocation5 + $0x58] sm:$0xff]
        %v340 = vld [vmem:[#allocation5 + $0x60] sm:$0xff]
        %v341 = vld [vmem:[#allocation5 + $0x68] sm:$0xff]
        %v342 = vld [vmem:[#allocation5 + $0x70] sm:$0xff]
        %v343 = vld [vmem:[#allocation5 + $0x78] sm:$0xff]
        %v344 = vld [vmem:[#allocation5 + $0x80] sm:$0xff]
        %v345 = vld [vmem:[#allocation5 + $0x88] sm:$0xff]
        %v346 = vld [vmem:[#allocation5 + $0x90] sm:$0xff]
        %v347 = vld [vmem:[#allocation5 + $0x98] sm:$0xff]
        %v348 = vld [vmem:[#allocation5 + $0xa0] sm:$0xff]
        %v349 = vld [vmem:[#allocation5 + $0xa8] sm:$0xff]
        %v350 = vld [vmem:[#allocation5 + $0xb0] sm:$0xff]
        %v351 = vld [vmem:[#allocation5 + $0xb8] sm:$0xff]
        %v352 = vld [vmem:[#allocation5 + $0xc0] sm:$0xff]
        %v353 = vld [vmem:[#allocation5 + $0xc8] sm:$0xff]
        %v354 = vld [vmem:[#allocation5 + $0xd0] sm:$0xff]
        %v355 = vld [vmem:[%s2] sm:$0x1]
        %v356 = vld [vmem:[%s3] sm:$0x1]
        %359 = vrot.lane.b32.xlu0 %v326, 124
        %v360 = vpop.permute.xlu0 %359
        %361 = vrot.lane.b32.xlu0 %v327, 124
        %v362 = vpop.permute.xlu0 %361
        %365 = vrot.lane.b32.xlu0 %v326, 4
        %v366 = vpop.permute.xlu0 %365
        %367 = vrot.lane.b32.xlu0 %v327, 4
        %v368 = vpop.permute.xlu0 %367
        %371 = vrot.lane.b32.xlu0 %v326, 12
        %v372 = vpop.permute.xlu0 %371
        %373 = vrot.lane.b32.xlu0 %v327, 12
        %v374 = vpop.permute.xlu0 %373
        %vm377 = vcmask 31744
        %v378 = vsel %vm377, %v360, %v366
        %v379 = vsel %vm377, %v362, %v368
        %vm380 = vcmask 556032
        %v381 = vsel %vm380, %v378, %v372
        %v382 = vsel %vm380, %v379, %v374
        %v384 = vrot.slane %v381, 1
        %vm387 = vcmask 1040384
        %v388 = vrot.slane %v381, 7
        %v389 = vrot.slane %v382, 7
        %v390 = vsel %vm387, %v388, %v389
        %v394 = vrot.slane %v382, 5
        %v396 = vsel %vm387, %v384, %v388
        %v397 = vsel %vm387, %v389, %v394
        %vm400 = vcmask 1046528
        %v401 = vrot.slane %v396, 1
        %v402 = vrot.slane %v390, 1
        %v403 = vsel %vm400, %v401, %v402
        %v404 = vrot.slane %v397, 1
        %v405 = vsel %vm400, %v402, %v404
        %406 = vrot.lane.b32.xlu0 %v403, 72
        %v407 = vpop.permute.xlu0 %406
        %408 = vrot.lane.b32.xlu0 %v405, 72
        %v409 = vpop.permute.xlu0 %408
        %vm412 = vcmask 1045504
        %v413 = vrot.slane %v396, 2
        %v414 = vrot.slane %v390, 2
        %v415 = vsel %vm412, %v413, %v414
        %v416 = vrot.slane %v397, 2
        %v417 = vsel %vm412, %v414, %v416
        %418 = vrot.lane.b32.xlu0 %v415, 16
        %v419 = vpop.permute.xlu0 %418
        %420 = vrot.lane.b32.xlu0 %v417, 16
        %v421 = vpop.permute.xlu0 %420
        %vm424 = vcmask 588800
        %v425 = vsel %vm424, %v396, %v407
        %v426 = vsel %vm424, %v390, %v409
        %vm427 = vcmask 130048
        %v428 = vsel %vm427, %v407, %v419
        %v429 = vsel %vm427, %v409, %v421
        %vm430 = vcmask 719872
        %v432 = vsel %vm430, %v428, 0
        %v435 = vsel %vm430, %v429, 0
        %437 = vmatprep.subr.mxu0 0.0
        %438 = vmatpush1.msra.mxu0 %v343
        %439 = vmatprep.subr.mxu0 0.0
        %440 = vmatpush1.msra.mxu0 %v342
        %441 = vmatprep.subr.mxu0 0.0
        %442 = vmatpush1.msra.mxu0 %v341
        %443 = vmatprep.subr.mxu0 0.0
        %444 = vmatpush1.msra.mxu0 %v340
        %445 = vmatprep.subr.mxu0 0.0
        %446 = vmatpush1.msra.mxu0 %v339
        %447 = vmatprep.subr.mxu0 0.0
        %448 = vmatpush1.msra.mxu0 %v338
        %449 = vmatprep.subr.mxu0 0.0
        %450 = vmatpush1.msra.mxu0 %v337
        %451 = vmatprep.subr.mxu0 0.0
        %452 = vmatpush1.msra.mxu0 %v336
        %453 = vmatprep.subr.mxu0 0.0
        %454 = vmatpush1.msra.mxu0 %v335
        %455 = vmatprep.subr.mxu0 0.0
        %456 = vmatpush1.msra.mxu0 %v334
        %457 = vmatprep.subr.mxu0 0.0
        %458 = vmatpush1.msra.mxu0 %v333
        %459 = vmatprep.subr.mxu0 0.0
        %460 = vmatpush1.msra.mxu0 %v332
        %461 = vmatprep.subr.mxu0 0.0
        %462 = vmatpush1.msra.mxu0 %v331
        %463 = vmatprep.subr.mxu0 0.0
        %464 = vmatpush1.msra.mxu0 %v330
        %465 = vmatprep.subr.mxu0 0.0
        %466 = vmatpush1.msra.mxu0 %v329
        %467 = vmatprep.subr.mxu0 0.0
        %468 = vmatpush1.msra.mxu0 %v328
        %469 = vmatprep.subr.mxu0 0.0
        %470 = vmatpush2.msra.mxu0 0.0
        %471 = vmatprep.subr.mxu0 0.0
        %472 = vmatpush2.msra.mxu0 0.0
        %473 = vmatprep.subr.mxu0 0.0
        %474 = vmatpush2.msra.mxu0 0.0
        %475 = vmatprep.subr.mxu0 0.0
        %476 = vmatpush2.msra.mxu0 0.0
        %477 = vmatprep.subr.mxu0 0.0
        %478 = vmatpush2.msra.mxu0 0.0
        %479 = vmatprep.subr.mxu0 0.0
        %480 = vmatpush2.msra.mxu0 %v354
        %481 = vmatprep.subr.mxu0 0.0
        %482 = vmatpush2.msra.mxu0 %v353
        %483 = vmatprep.subr.mxu0 0.0
        %484 = vmatpush2.msra.mxu0 %v352
        %485 = vmatprep.subr.mxu0 0.0
        %486 = vmatpush2.msra.mxu0 %v351
        %487 = vmatprep.subr.mxu0 0.0
        %488 = vmatpush2.msra.mxu0 %v350
        %489 = vmatprep.subr.mxu0 0.0
        %490 = vmatpush2.msra.mxu0 %v349
        %491 = vmatprep.subr.mxu0 0.0
        %492 = vmatpush2.msra.mxu0 %v348
        %493 = vmatprep.subr.mxu0 0.0
        %494 = vmatpush2.msra.mxu0 %v347
        %495 = vmatprep.subr.mxu0 0.0
        %496 = vmatpush2.msra.mxu0 %v346
        %497 = vmatprep.subr.mxu0 0.0
        %498 = vmatpush2.msra.mxu0 %v345
        %499 = vmatprep.subr.mxu0 0.0
        %500 = vmatpush2.msra.mxu0 %v344
        %501 = vmatprep.mubr.f32.mxu0 %v432
        %502 = vmatmul.mubr.f32.gmra.mxu0 %v425
        %v503 = vpop.f32.mrf.mxu0
        %v504 = vadd.f32 0.0, %v503
        %v505 = vpop.f32.mrf.mxu0
        %506 = vmatprep.mubr.f32.mxu0 %v435
        %507 = vmatmul.mubr.f32.gmra.mxu0 %v426
        %v508 = vpop.f32.mrf.mxu0
        %v509 = vadd.f32 0.0, %v508
        %v510 = vpop.f32.mrf.mxu0
        %511 = vdwg.mxu0
        %v513 = vlaneseq
        %v514 = vshrl.u32 %v513, 7
        %v515 = vsub.s32 0, %v514
        %v516 = vrot.slane %v355, %v515
        %v518 = vmul.f32 %v504, %v516
        %v519 = vmul.f32 %v509, %v516
        %v521 = vlaneseq
        %v522 = vshrl.u32 %v521, 7
        %v523 = vsub.s32 0, %v522
        %v524 = vrot.slane %v356, %v523
        %v526 = vadd.f32 %v518, %v524
        %v527 = vadd.f32 %v519, %v524
        %vm528 = vcmp.ge.f32.partialorder %v526, 0.0
        %vm529 = vcmp.ge.f32.partialorder %v527, 0.0
        %v530 = vmul.f32 %v526, 0.01
        %v531 = vmul.f32 %v527, 0.01
        %v532 = vsel %vm528, %v526, %v530
        %v533 = vsel %vm529, %v527, %v531
        %v534 = vld [vmem:[#allocation7] sm:$0xff]
        %v535 = vld [vmem:[#allocation7 + $0x8] sm:$0xff]
        %v536 = vld [vmem:[#allocation7 + $0x10] sm:$0xff]
        %v537 = vld [vmem:[#allocation7 + $0x18] sm:$0xff]
        %v538 = vld [vmem:[#allocation7 + $0x20] sm:$0xff]
        %v539 = vld [vmem:[#allocation7 + $0x28] sm:$0xff]
        %v540 = vld [vmem:[#allocation7 + $0x30] sm:$0xff]
        %v541 = vld [vmem:[#allocation7 + $0x38] sm:$0xff]
        %v542 = vld [vmem:[#allocation7 + $0x40] sm:$0xff]
        %v543 = vld [vmem:[#allocation7 + $0x48] sm:$0xff]
        %v544 = vld [vmem:[#allocation7 + $0x50] sm:$0xff]
        %v545 = vld [vmem:[#allocation7 + $0x58] sm:$0xff]
        %v546 = vld [vmem:[#allocation7 + $0x60] sm:$0xff]
        %v547 = vld [vmem:[#allocation7 + $0x68] sm:$0xff]
        %v548 = vld [vmem:[#allocation7 + $0x70] sm:$0xff]
        %v549 = vld [vmem:[#allocation7 + $0x78] sm:$0xff]
        %v550 = vld [vmem:[#allocation7 + $0x80] sm:$0xff]
        %v551 = vld [vmem:[#allocation7 + $0x88] sm:$0xff]
        %v552 = vld [vmem:[#allocation7 + $0x90] sm:$0xff]
        %v553 = vld [vmem:[#allocation7 + $0x98] sm:$0xff]
        %v554 = vld [vmem:[#allocation7 + $0xa0] sm:$0xff]
        %v555 = vld [vmem:[#allocation7 + $0xa8] sm:$0xff]
        %v556 = vld [vmem:[#allocation7 + $0xb0] sm:$0xff]
        %v557 = vld [vmem:[#allocation7 + $0xb8] sm:$0xff]
        %v558 = vld [vmem:[#allocation7 + $0xc0] sm:$0xff]
        %v559 = vld [vmem:[#allocation7 + $0xc8] sm:$0xff]
        %v560 = vld [vmem:[#allocation7 + $0xd0] sm:$0xff]
        %v561 = vld [vmem:[#allocation7 + $0xd8] sm:$0xff]
        %v562 = vld [vmem:[#allocation7 + $0xe0] sm:$0xff]
        %v563 = vld [vmem:[#allocation7 + $0xe8] sm:$0xff]
        %v564 = vld [vmem:[#allocation7 + $0xf0] sm:$0xff]
        %v565 = vld [vmem:[#allocation7 + $0xf8] sm:$0xff]
        %v566 = vld [vmem:[#allocation7 + $0x100] sm:$0xff]
        %v567 = vld [vmem:[#allocation7 + $0x108] sm:$0xff]
        %v568 = vld [vmem:[#allocation7 + $0x110] sm:$0xff]
        %v569 = vld [vmem:[#allocation7 + $0x118] sm:$0xff]
        %v570 = vld [vmem:[#allocation7 + $0x120] sm:$0xff]
        %v571 = vld [vmem:[#allocation7 + $0x128] sm:$0xff]
        %v572 = vld [vmem:[#allocation7 + $0x130] sm:$0xff]
        %v573 = vld [vmem:[#allocation7 + $0x138] sm:$0xff]
        %v574 = vld [vmem:[#allocation7 + $0x140] sm:$0xff]
        %v575 = vld [vmem:[#allocation7 + $0x148] sm:$0xff]
        %v576 = vld [vmem:[#allocation7 + $0x150] sm:$0xff]
        %v577 = vld [vmem:[#allocation7 + $0x158] sm:$0xff]
        %v578 = vld [vmem:[#allocation7 + $0x160] sm:$0xff]
        %v579 = vld [vmem:[#allocation7 + $0x168] sm:$0xff]
        %v580 = vld [vmem:[#allocation7 + $0x170] sm:$0xff]
        %v581 = vld [vmem:[#allocation7 + $0x178] sm:$0xff]
        %v582 = vld [vmem:[#allocation7 + $0x180] sm:$0xff]
        %v583 = vld [vmem:[#allocation7 + $0x188] sm:$0xff]
        %v584 = vld [vmem:[#allocation7 + $0x190] sm:$0xff]
        %v585 = vld [vmem:[#allocation7 + $0x198] sm:$0xff]
        %v586 = vld [vmem:[#allocation7 + $0x1a0] sm:$0xff]
        %v587 = vld [vmem:[#allocation7 + $0x1a8] sm:$0xff]
        %v588 = vld [vmem:[%s5] sm:$0x1]
        %v589 = vld [vmem:[%s6] sm:$0x1]
        %592 = vrot.lane.b32.xlu0 %v532, 120
        %v593 = vpop.permute.xlu0 %592
        %594 = vrot.lane.b32.xlu0 %v533, 120
        %v595 = vpop.permute.xlu0 %594
        %598 = vrot.lane.b32.xlu0 %v532, 8
        %v599 = vpop.permute.xlu0 %598
        %600 = vrot.lane.b32.xlu0 %v533, 8
        %v601 = vpop.permute.xlu0 %600
        %604 = vrot.lane.b32.xlu0 %v532, 24
        %v605 = vpop.permute.xlu0 %604
        %606 = vrot.lane.b32.xlu0 %v533, 24
        %v607 = vpop.permute.xlu0 %606
        %vm610 = vcmask 64512
        %v611 = vsel %vm610, %v593, %v599
        %v612 = vsel %vm610, %v595, %v601
        %v613 = vsel %vm610, %v599, %v605
        %v614 = vsel %vm610, %v601, %v607
        %v617 = vrot.slane %v611, 1
        %v618 = vrot.slane %v613, 1
        %v623 = vrot.slane %v611, 7
        %v624 = vrot.slane %v613, 7
        %v625 = vrot.slane %v612, 7
        %v626 = vsel %vm387, %v623, %v625
        %v627 = vrot.slane %v614, 7
        %v628 = vsel %vm387, %v624, %v627
        %v635 = vrot.slane %v612, 5
        %v636 = vrot.slane %v614, 5
        %v639 = vsel %vm387, %v617, %v623
        %v640 = vsel %vm387, %v618, %v624
        %v641 = vsel %vm387, %v625, %v635
        %v642 = vsel %vm387, %v627, %v636
        %v647 = vrot.slane %v639, 1
        %v648 = vrot.slane %v626, 1
        %v649 = vsel %vm400, %v647, %v648
        %v650 = vrot.slane %v640, 1
        %v651 = vrot.slane %v628, 1
        %v652 = vsel %vm400, %v650, %v651
        %v653 = vrot.slane %v641, 1
        %v654 = vsel %vm400, %v648, %v653
        %v655 = vrot.slane %v642, 1
        %v656 = vsel %vm400, %v651, %v655
        %657 = vrot.lane.b32.xlu0 %v649, 16
        %v658 = vpop.permute.xlu0 %657
        %659 = vrot.lane.b32.xlu0 %v652, 16
        %v660 = vpop.permute.xlu0 %659
        %661 = vrot.lane.b32.xlu0 %v654, 16
        %v662 = vpop.permute.xlu0 %661
        %663 = vrot.lane.b32.xlu0 %v656, 16
        %v664 = vpop.permute.xlu0 %663
        %v665 = vsel %vm427, %v658, %v660
        %v666 = vsel %vm427, %v662, %v664
        %v671 = vrot.slane %v639, 2
        %v672 = vrot.slane %v626, 2
        %v673 = vsel %vm412, %v671, %v672
        %v674 = vrot.slane %v640, 2
        %v675 = vrot.slane %v628, 2
        %v676 = vsel %vm412, %v674, %v675
        %v677 = vrot.slane %v641, 2
        %v678 = vsel %vm412, %v672, %v677
        %v679 = vrot.slane %v642, 2
        %v680 = vsel %vm412, %v675, %v679
        %681 = vrot.lane.b32.xlu0 %v673, 32
        %v682 = vpop.permute.xlu0 %681
        %683 = vrot.lane.b32.xlu0 %v676, 32
        %v684 = vpop.permute.xlu0 %683
        %685 = vrot.lane.b32.xlu0 %v678, 32
        %v686 = vpop.permute.xlu0 %685
        %687 = vrot.lane.b32.xlu0 %v680, 32
        %v688 = vpop.permute.xlu0 %687
        %vm689 = vcmask 261120
        %v690 = vsel %vm689, %v682, %v684
        %v691 = vsel %vm689, %v686, %v688
        %v694 = vsel %vm427, %v640, %v658
        %v695 = vsel %vm427, %v628, %v662
        %v696 = vsel %vm689, %v665, %v682
        %v697 = vsel %vm689, %v666, %v686
        %vm698 = vcmask 392192
        %v699 = vsel %vm698, %v690, 0
        %v701 = vsel %vm698, %v691, 0
        %703 = vmatprep.subr.mxu0 0.0
        %704 = vmatpush1.msra.mxu0 %v549
        %705 = vmatprep.subr.mxu0 0.0
        %706 = vmatpush1.msra.mxu0 %v548
        %707 = vmatprep.subr.mxu0 0.0
        %708 = vmatpush1.msra.mxu0 %v547
        %709 = vmatprep.subr.mxu0 0.0
        %710 = vmatpush1.msra.mxu0 %v546
        %711 = vmatprep.subr.mxu0 0.0
        %712 = vmatpush1.msra.mxu0 %v545
        %713 = vmatprep.subr.mxu0 0.0
        %714 = vmatpush1.msra.mxu0 %v544
        %715 = vmatprep.subr.mxu0 0.0
        %716 = vmatpush1.msra.mxu0 %v543
        %717 = vmatprep.subr.mxu0 0.0
        %718 = vmatpush1.msra.mxu0 %v542
        %719 = vmatprep.subr.mxu0 0.0
        %720 = vmatpush1.msra.mxu0 %v541
        %721 = vmatprep.subr.mxu0 0.0
        %722 = vmatpush1.msra.mxu0 %v540
        %723 = vmatprep.subr.mxu0 0.0
        %724 = vmatpush1.msra.mxu0 %v539
        %725 = vmatprep.subr.mxu0 0.0
        %726 = vmatpush1.msra.mxu0 %v538
        %727 = vmatprep.subr.mxu0 0.0
        %728 = vmatpush1.msra.mxu0 %v537
        %729 = vmatprep.subr.mxu0 0.0
        %730 = vmatpush1.msra.mxu0 %v536
        %731 = vmatprep.subr.mxu0 0.0
        %732 = vmatpush1.msra.mxu0 %v535
        %733 = vmatprep.subr.mxu0 0.0
        %734 = vmatpush1.msra.mxu0 %v534
        %735 = vmatprep.subr.mxu0 0.0
        %736 = vmatpush2.msra.mxu0 %v565
        %737 = vmatprep.subr.mxu0 0.0
        %738 = vmatpush2.msra.mxu0 %v564
        %739 = vmatprep.subr.mxu0 0.0
        %740 = vmatpush2.msra.mxu0 %v563
        %741 = vmatprep.subr.mxu0 0.0
        %742 = vmatpush2.msra.mxu0 %v562
        %743 = vmatprep.subr.mxu0 0.0
        %744 = vmatpush2.msra.mxu0 %v561
        %745 = vmatprep.subr.mxu0 0.0
        %746 = vmatpush2.msra.mxu0 %v560
        %747 = vmatprep.subr.mxu0 0.0
        %748 = vmatpush2.msra.mxu0 %v559
        %749 = vmatprep.subr.mxu0 0.0
        %750 = vmatpush2.msra.mxu0 %v558
        %751 = vmatprep.subr.mxu0 0.0
        %752 = vmatpush2.msra.mxu0 %v557
        %753 = vmatprep.subr.mxu0 0.0
        %754 = vmatpush2.msra.mxu0 %v556
        %755 = vmatprep.subr.mxu0 0.0
        %756 = vmatpush2.msra.mxu0 %v555
        %757 = vmatprep.subr.mxu0 0.0
        %758 = vmatpush2.msra.mxu0 %v554
        %759 = vmatprep.subr.mxu0 0.0
        %760 = vmatpush2.msra.mxu0 %v553
        %761 = vmatprep.subr.mxu0 0.0
        %762 = vmatpush2.msra.mxu0 %v552
        %763 = vmatprep.subr.mxu0 0.0
        %764 = vmatpush2.msra.mxu0 %v551
        %765 = vmatprep.subr.mxu0 0.0
        %766 = vmatpush2.msra.mxu0 %v550
        %767 = vmatprep.mubr.f32.mxu0 %v694
        %768 = vmatmul.mubr.f32.gmra.mxu0 %v639
        %v769 = vpop.f32.mrf.mxu0
        %v770 = vadd.f32 0.0, %v769
        %v771 = vpop.f32.mrf.mxu0
        %772 = vmatprep.mubr.f32.mxu0 %v695
        %773 = vmatmul.mubr.f32.gmra.mxu0 %v626
        %v774 = vpop.f32.mrf.mxu0
        %v775 = vadd.f32 0.0, %v774
        %v776 = vpop.f32.mrf.mxu0
        %777 = vdwg.mxu0
        %778 = vmatprep.subr.mxu0 0.0
        %779 = vmatpush1.msra.mxu0 %v581
        %780 = vmatprep.subr.mxu0 0.0
        %781 = vmatpush1.msra.mxu0 %v580
        %782 = vmatprep.subr.mxu0 0.0
        %783 = vmatpush1.msra.mxu0 %v579
        %784 = vmatprep.subr.mxu0 0.0
        %785 = vmatpush1.msra.mxu0 %v578
        %786 = vmatprep.subr.mxu0 0.0
        %787 = vmatpush1.msra.mxu0 %v577
        %788 = vmatprep.subr.mxu0 0.0
        %789 = vmatpush1.msra.mxu0 %v576
        %790 = vmatprep.subr.mxu0 0.0
        %791 = vmatpush1.msra.mxu0 %v575
        %792 = vmatprep.subr.mxu0 0.0
        %793 = vmatpush1.msra.mxu0 %v574
        %794 = vmatprep.subr.mxu0 0.0
        %795 = vmatpush1.msra.mxu0 %v573
        %796 = vmatprep.subr.mxu0 0.0
        %797 = vmatpush1.msra.mxu0 %v572
        %798 = vmatprep.subr.mxu0 0.0
        %799 = vmatpush1.msra.mxu0 %v571
        %800 = vmatprep.subr.mxu0 0.0
        %801 = vmatpush1.msra.mxu0 %v570
        %802 = vmatprep.subr.mxu0 0.0
        %803 = vmatpush1.msra.mxu0 %v569
        %804 = vmatprep.subr.mxu0 0.0
        %805 = vmatpush1.msra.mxu0 %v568
        %806 = vmatprep.subr.mxu0 0.0
        %807 = vmatpush1.msra.mxu0 %v567
        %808 = vmatprep.subr.mxu0 0.0
        %809 = vmatpush1.msra.mxu0 %v566
        %810 = vmatprep.subr.mxu0 0.0
        %811 = vmatpush2.msra.mxu0 0.0
        %812 = vmatprep.subr.mxu0 0.0
        %813 = vmatpush2.msra.mxu0 0.0
        %814 = vmatprep.subr.mxu0 0.0
        %815 = vmatpush2.msra.mxu0 0.0
        %816 = vmatprep.subr.mxu0 0.0
        %817 = vmatpush2.msra.mxu0 0.0
        %818 = vmatprep.subr.mxu0 0.0
        %819 = vmatpush2.msra.mxu0 0.0
        %820 = vmatprep.subr.mxu0 0.0
        %821 = vmatpush2.msra.mxu0 0.0
        %822 = vmatprep.subr.mxu0 0.0
        %823 = vmatpush2.msra.mxu0 0.0
        %824 = vmatprep.subr.mxu0 0.0
        %825 = vmatpush2.msra.mxu0 0.0
        %826 = vmatprep.subr.mxu0 0.0
        %827 = vmatpush2.msra.mxu0 0.0
        %828 = vmatprep.subr.mxu0 0.0
        %829 = vmatpush2.msra.mxu0 0.0
        %830 = vmatprep.subr.mxu0 0.0
        %831 = vmatpush2.msra.mxu0 %v587
        %832 = vmatprep.subr.mxu0 0.0
        %833 = vmatpush2.msra.mxu0 %v586
        %834 = vmatprep.subr.mxu0 0.0
        %835 = vmatpush2.msra.mxu0 %v585
        %836 = vmatprep.subr.mxu0 0.0
        %837 = vmatpush2.msra.mxu0 %v584
        %838 = vmatprep.subr.mxu0 0.0
        %839 = vmatpush2.msra.mxu0 %v583
        %840 = vmatprep.subr.mxu0 0.0
        %841 = vmatpush2.msra.mxu0 %v582
        %842 = vmatprep.mubr.f32.mxu0 %v699
        %843 = vmatmul.mubr.f32.gmra.mxu0 %v696
        %v844 = vpop.f32.mrf.mxu0
        %v845 = vadd.f32 %v770, %v844
        %v846 = vpop.f32.mrf.mxu0
        %847 = vmatprep.mubr.f32.mxu0 %v701
        %848 = vmatmul.mubr.f32.gmra.mxu0 %v697
        %v849 = vpop.f32.mrf.mxu0
        %v850 = vadd.f32 %v775, %v849
        %v851 = vpop.f32.mrf.mxu0
        %852 = vdwg.mxu0
        %v854 = vlaneseq
        %v855 = vshrl.u32 %v854, 7
        %v856 = vsub.s32 0, %v855
        %v857 = vrot.slane %v588, %v856
        %v859 = vmul.f32 %v845, %v857
        %v860 = vmul.f32 %v850, %v857
        %v862 = vlaneseq
        %v863 = vshrl.u32 %v862, 7
        %v864 = vsub.s32 0, %v863
        %v865 = vrot.slane %v589, %v864
        %v867 = vadd.f32 %v859, %v865
        %v868 = vadd.f32 %v860, %v865
        %vm869 = vcmp.ge.f32.partialorder %v867, 0.0
        %vm870 = vcmp.ge.f32.partialorder %v868, 0.0
        %v871 = vmul.f32 %v867, 0.01
        %v872 = vmul.f32 %v868, 0.01
        %v873 = vsel %vm869, %v867, %v871
        %v874 = vsel %vm870, %v868, %v872
        %875 = vst [vmem:[%s325] sm:$0xff] %v873
        %876 = vst [vmem:[%s325 + $0x8] sm:$0xff] %v874
        %s877 = sand.u32 %s185, 1
        %s878 = scalar_lea.sflag [#allocation4], %s877
        %s879 = sand.u32 %s185, 1
        %s880 = smul.addr %s879, 16
        %s881 = scalar_lea.vmem [#allocation8], %s880
        // Predicated region
        $region61: #{tpu_custom_call.1} parent=47 // pred_check
          %p882 = pneg %p195
        $region62: #{tpu_custom_call.1} parent=47 // pred_check_branch
          %884 = sbr.rel (%p882) target = $region64
        $region63: #{tpu_custom_call.1} parent=47 // pred_region
          %s886 = ssub.s32 256, 256
          %887 = vsyncadd %s878, %s886
          %s888 = smul.addr %s25, 2
          %s889 = smul.addr %s888, 128
          %s890 = scalar_lea.hbm %s7, %s889
          %s891 = sshll.u32 %s881, 4
          %s892 = int_to_ptr.vmem [resolvable:$true] %s891
          %897 = dma.vmem_to_hbm [thread:$0]  %s892, 256, %s890, %s878, 128, 128, 8
        $region64: #{tpu_custom_call.1} parent=47 // pred_fallthru
          _
      $region48: #{tpu_custom_call.1} parent=5 // pred_fallthru
        _
      %p898 = scmp.le.s32.totalorder 2, %s20
      // Predicated region
      $region65: #{tpu_custom_call.1} parent=5 // pred_check
        %p899 = pneg %p898
      $region66: #{tpu_custom_call.1} parent=5 // pred_check_branch
        %901 = sbr.rel (%p899) target = $region68
      $region67: #{tpu_custom_call.1} parent=5 // pred_region
        %s902 = ssub.s32 %s20, 2
        // Predicated region
        $region69: #{tpu_custom_call.1} parent=67 // pred_check
          %p903 = pneg %p201
        $region70: #{tpu_custom_call.1} parent=67 // pred_check_branch
          %905 = sbr.rel (%p903) target = $region72
        $region71: #{tpu_custom_call.1} parent=67 // pred_region
          %s906 = sand.u32 %s186, 1
          %s907 = scalar_lea.sflag [#allocation4], %s906
          %s908 = sand.u32 %s186, 1
          %s909 = smul.addr %s908, 16
          %s910 = scalar_lea.vmem [#allocation8], %s909
          %911 = dma.done %s907, 256
        $region72: #{tpu_custom_call.1} parent=67 // pred_fallthru
          _
      $region68: #{tpu_custom_call.1} parent=5 // pred_fallthru
        _
    $region6: #{tpu_custom_call.1} parent=1 // loop_footer
      %s24 = sadd.s32 1, %s20
    $region7: #{tpu_custom_call.1} parent=1 // loop_footer_branch
      %19 = sbr.rel target = $region3
    $region8: #{tpu_custom_call.1} parent=1 // loop_exit
      _
    %912 = vsyncpa [#allocation3], 1
    %s913 = scalar_lea.sflag [#allocation3], 1
    %914 = vsyncpa %s913, 1
    %915 = vsyncpa [#allocation6], 1
    %916 = vsyncpa [#allocation4], 1
    %s917 = scalar_lea.sflag [#allocation4], 1
    %918 = vsyncpa %s917, 1

</llo_original>
